<compile_context>
chip_gen: v5e
topology: v5e:2x2
jax: 0.10.0
libtpu: 0.0.40
codegen_flags: <defaults>
</compile_context>

<pallas_src>
import math

import jax
import jax.numpy as jnp
from jax.experimental import pallas as pl
from jax.experimental.pallas import tpu as pltpu


def _scale_mul_kernel(scale_ref, x_ref, o_ref):
    # scale_ref: (B, tD)   -- resident across the whole grid (tiny)
    # x_ref:     (tT, tD)  -- x tile (leading batch dim squeezed)
    # o_ref:     (tT, tD)
    b = pl.program_id(0)
    scale = scale_ref[pl.ds(b, 1), :]                    # (1, tD)
    o_ref[...] = (x_ref[...] * scale).astype(o_ref.dtype)


def _default_tile_bytes():
    # v6e/v7x: 4 MiB tiles (x + out, double-buffered -> 16 MiB pipeline VMEM,
    # under the 32 MiB scoped default).  v5e / unknown: 2 MiB (8 MiB pipeline
    # VMEM, under v5e's 16 MiB scoped default).
    try:
        kind = jax.devices()[0].device_kind.lower()
    except Exception:
        kind = ""
    if "v6" in kind or "v7" in kind:
        return 4 << 20
    return 2 << 20


def scale_conditioner(x, embedding, weight_t, bias, *, target_tile_bytes=None,
                      donate_x=False):
    """x: (B, T, D); embedding: (B, E); weight_t: (E, D); bias: (D,)."""
    B, T, D = x.shape
    itemsize = jnp.dtype(x.dtype).itemsize
    if target_tile_bytes is None:
        target_tile_bytes = _default_tile_bytes()

    # ---- Hoisted scale GEMM (one tiny matmul, left to XLA) -----------------
    scale = (jnp.dot(embedding, weight_t, preferred_element_type=jnp.float32)
             + bias.astype(jnp.float32)).astype(x.dtype)          # (B, D)

    # ---- Lane-dense fold: smallest k such that (D*k) % 128 == 0 ------------
    k = 128 // math.gcd(D, 128)
    if k > 1 and T % k != 0:
        k = 1        # fallback: still correct, stores may be lane-masked
    T_eff, D_eff = T // k, D * k
    x_eff = x.reshape(B, T_eff, D_eff)
    scale_eff = jnp.tile(scale, (1, k)) if k > 1 else scale       # (B, D_eff)

    # ---- dtype-aware sublane granularity ------------------------------------
    sub = 8 * max(1, 4 // itemsize)        # f32: 8, bf16: 16, int8/fp8: 32

    # ---- Feature-axis tiling only if a minimum slab exceeds the budget ------
    if D_eff % 128 == 0 and D_eff * sub * itemsize > target_tile_bytes:
        max_lanes = max(128, ((target_tile_bytes // (sub * itemsize)) // 128) * 128)
        tD = min(D_eff, max_lanes)
    else:
        tD = D_eff
    nD = pl.cdiv(D_eff, tD)

    # ---- Tile T_eff so an x tile is ~target_tile_bytes ----------------------
    row_bytes = tD * itemsize
    max_rows = max(1, target_tile_bytes // row_bytes)
    if T_eff <= max_rows:
        tT = T_eff                             # single block: full extent
    else:
        tT = max(sub, (max_rows // sub) * sub)  # dtype-aware sublane multiple
        tT = min(tT, T_eff)
    nT = pl.cdiv(T_eff, tT)

    grid = (B, nT, nD)

    cost = pl.CostEstimate(
        flops=B * T * D,                       # one multiply per element
        transcendentals=0,
        bytes_accessed=(2 * B * T_eff * D_eff + B * D_eff) * itemsize)

    out = pl.pallas_call(
        _scale_mul_kernel,
        out_shape=jax.ShapeDtypeStruct((B, T_eff, D_eff), x.dtype),
        grid_spec=pltpu.PrefetchScalarGridSpec(
            num_scalar_prefetch=0,
            grid=grid,
            in_specs=[
                # scale: full-array block, constant index over (b, t) -> stays
                # resident in VMEM for the whole grid (only the D-tile changes).
                pl.BlockSpec((B, tD), lambda b, t, d: (0, d)),
                # x tile: leading batch dim squeezed -> kernel sees (tT, tD).
                pl.BlockSpec((None, tT, tD), lambda b, t, d: (b, t, d)),
            ],
            out_specs=pl.BlockSpec((None, tT, tD), lambda b, t, d: (b, t, d)),
        ),
        compiler_params=pltpu.CompilerParams(
            dimension_semantics=("parallel", "parallel", "parallel")),
        cost_estimate=cost,
        input_output_aliases=({1: 0} if donate_x else {}),
    )(scale_eff, x_eff)

    return out.reshape(B, T, D)


if __name__ == "__main__":
    key = jax.random.PRNGKey(0)

    def run_case(B, T, E, D, dtype=jnp.float32, **kw):
        ks = jax.random.split(jax.random.fold_in(key, T * 1000 + D), 4)
        x = jax.random.normal(ks[0], (B, T, D), dtype=dtype)
        emb = jax.random.normal(ks[1], (B, E), dtype=dtype)
        # PyTorch nn.Linear weight is (input_dim, embedding_dim); pass it transposed.
        w = jax.random.normal(ks[2], (D, E), dtype=dtype) * 0.1
        b = jax.random.normal(ks[3], (D,), dtype=dtype) * 0.1
        wt = w.T
        out = jax.block_until_ready(scale_conditioner(x, emb, wt, b, **kw))
        ref = x * (emb @ wt + b)[:, None, :]
        assert jnp.allclose(out, ref, atol=1e-5, rtol=1e-5), "mismatch vs reference"

    # Main case: lane-dense fold path (D=64 -> k=2, D_eff=128).
    run_case(B=2, T=8, E=32, D=64)
    # Ragged-last-tile path: tiny tile budget forces nT=3 (T_eff=20, tT=8).
    run_case(B=2, T=40, E=32, D=64, target_tile_bytes=4096)
    # Fallback path: D=48, T=10 (fold needs k=8) -> k=1, lane-masked stores.
    run_case(B=2, T=10, E=32, D=48)

    print("KERNEL_OK")
</pallas_src>

<mosaic_0001>
module attributes {stable_mosaic.version = 11 : i64} {
  func.func @_scale_mul_kernel(%arg0: i32, %arg1: i32, %arg2: i32, %arg3: memref<2x128xf32, #tpu.memory_space<vmem>>, %arg4: memref<1x4x128xf32, #tpu.memory_space<vmem>>, %arg5: memref<1x4x128xf32, #tpu.memory_space<vmem>>) attributes {dimension_semantics = [#tpu.dimension_semantics<parallel>, #tpu.dimension_semantics<parallel>, #tpu.dimension_semantics<parallel>], iteration_bounds = array<i64: 2, 1, 1>, scalar_prefetch = 0 : i64, scratch_operands = 0 : i64, tpu.core_type = #tpu.core_type<tc>, window_params = [{transform_indices = @transform_0, window_bounds = array<i64: 2, 128>}, {transform_indices = @transform_1, window_bounds = array<i64: 1, 4, 128>}, {transform_indices = @transform_2, window_bounds = array<i64: 1, 4, 128>}]} {
    %0 = arith.index_cast %arg0 : i32 to index
    %c0 = arith.constant 0 : index
    %1 = vector.load %arg3[%0, %c0] : memref<2x128xf32, #tpu.memory_space<vmem>>, vector<1x128xf32>
    %c0_0 = arith.constant 0 : index
    %c0_1 = arith.constant 0 : index
    %c0_2 = arith.constant 0 : index
    %2 = vector.load %arg4[%c0_0, %c0_1, %c0_2] : memref<1x4x128xf32, #tpu.memory_space<vmem>>, vector<1x4x128xf32>
    %3 = vector.shape_cast %2 : vector<1x4x128xf32> to vector<4x128xf32>
    %4 = vector.broadcast %1 : vector<1x128xf32> to vector<4x128xf32>
    %5 = arith.mulf %3, %4 : vector<4x128xf32>
    %c0_3 = arith.constant 0 : index
    %c0_4 = arith.constant 0 : index
    %c0_5 = arith.constant 0 : index
    %6 = vector.load %arg5[%c0_3, %c0_4, %c0_5] : memref<1x4x128xf32, #tpu.memory_space<vmem>>, vector<1x4x128xf32>
    %7 = vector.shape_cast %6 : vector<1x4x128xf32> to vector<4x128xf32>
    %8 = vector.shape_cast %5 : vector<4x128xf32> to vector<1x4x128xf32>
    tpu.vector_store %arg5[%c0_3, %c0_4, %c0_5], %8 {strides = array<i32>} : memref<1x4x128xf32, #tpu.memory_space<vmem>>, vector<1x4x128xf32>,
    return
  }
  func.func @transform_0(%arg0: i32, %arg1: i32, %arg2: i32) -> (i32, i32) {
    %c0_i32 = arith.constant 0 : i32
    %c0_i32_0 = arith.constant 0 : i32
    return %c0_i32, %arg2 : i32, i32
  }
  func.func @transform_1(%arg0: i32, %arg1: i32, %arg2: i32) -> (i32, i32, i32) {
    %c0_i32 = arith.constant 0 : i32
    return %arg0, %arg1, %arg2 : i32, i32, i32
  }
  func.func @transform_2(%arg0: i32, %arg1: i32, %arg2: i32) -> (i32, i32, i32) {
    %c0_i32 = arith.constant 0 : i32
    return %arg0, %arg1, %arg2 : i32, i32, i32
  }
}

</mosaic_0001>

<llo_original>
// kernel: tpu_custom_call.1
$region0: #{tpu_custom_call.1}
  #allocation0 [shape = 'u32[]', space=smem, size = 0x4, offset = 0x4, fixed_abs, tag = 'smem constant byte address 0x4 - core index']
  #allocation1 [shape = 'u32[72,128]{1,0:T(1,128)}', space=vmem, size = 0x9000, scoped, tag = 'internal scratch']
  %s0 = inlined_call_operand.hbm [shape: f32[2,128], index: 0, kind: input, shape index: {}]
  %s1 = inlined_call_operand.hbm [shape: f32[2,4,128], index: 1, kind: input, shape index: {}]
  %s2 = inlined_call_operand.hbm [shape: f32[2,4,128], index: 2, kind: output, shape index: {}]
  %s3 = sld [smem:[#allocation0]]
  $region49: #{tpu_custom_call.1} parent=0
    _
  %s5 = ssub.s32 1, %s3
  %s6 = scalar_select 0, %s5, %s3
  $region1: #{tpu_custom_call.1} parent=0
    #allocation2 [shape = 'u8[1024]{0}', space=vmem, size = 0x400, scoped, tag = 'input window, operand 0, single buffered']
    #allocation3 [shape = 's32[2]{0}', space=sflag, size = 0x8, scoped, tag = 'scoped memory for tpu_custom_call.1']
    #allocation4 [shape = 's32[2]{0}', space=sflag, size = 0x8, scoped, tag = 'scoped memory for tpu_custom_call.1']
    #allocation5 [shape = 'u8[4096]{0}', space=vmem, size = 0x1000, scoped, tag = 'input window, operand 1']
    #allocation6 [shape = 's32[2]{0}', space=sflag, size = 0x8, scoped, tag = 'scoped memory for tpu_custom_call.1']
    #allocation7 [shape = 'u8[4096]{0}', space=vmem, size = 0x1000, scoped, tag = 'output window, operand 0']
    %7 = vsyncpa [#allocation3], 0
    %8 = vsyncpa [#allocation6], 0
    %s9 = scalar_lea.sflag [#allocation6], 1
    %10 = vsyncpa %s9, 0
    %11 = vsyncpa [#allocation4], 0
    %s12 = scalar_lea.sflag [#allocation4], 1
    %13 = vsyncpa %s12, 0
    loop: start=0, step=1, limit=4
    $region2: #{tpu_custom_call.1} parent=1 // loop_pre_header
      _
    $region3: #{tpu_custom_call.1} parent=1 // loop_header
      %s15 = sphi 0, %s19
      %p16 = scmp.ge.s32.totalorder %s15, 4
      %s22 = sphi 0, %s41
      %s23 = sphi 0, %s37
      %s24 = sphi 0, %s33
      %s25 = sphi 0, %s22
      %s26 = sphi 0, %s23
      %s27 = sphi 0, %s24
      %s28 = sphi 0, %s25
      %s29 = sphi 0, %s26
      %s30 = sphi 0, %s27
      %s44 = sphi 0, %s46
      %s47 = sphi 0, %s44
      %s48 = sphi 0, %s47
      %s64 = sphi 0, %s48
      %s74 = sphi 0, %s76
      %s77 = sphi 0, %s74
      %s78 = sphi 0, %s77
      %s94 = sphi 0, %s78
      %s104 = sphi 0, %s106
      %s107 = sphi 0, %s104
      %s108 = sphi 0, %s107
      %s124 = sphi 0, %s108
    $region4: #{tpu_custom_call.1} parent=1 // loop_header_branch
      %18 = sbr.rel (%p16) target = $region8
    $region5: #{tpu_custom_call.1} parent=1 // loop_body
      %s20 = ssub.s32 %s15, 1
      %s21 = ssub.s32 %s15, 2
      %s31 = sadd.s32 1, %s24
      %p32 = scmp.ge.s32.totalorder %s31, 1
      %s33 = scalar_select %p32, 0, %s31
      %s34 = sadd.s32 1, %s23
      %s35 = scalar_select %p32, %s34, %s23
      %p36 = scmp.ge.s32.totalorder %s35, 1
      %s37 = scalar_select %p36, 0, %s35
      %s38 = sadd.s32 1, %s22
      %s39 = scalar_select %p36, %s38, %s22
      %p40 = scmp.ge.s32.totalorder %s39, 2
      %s41 = scalar_select %p40, 0, %s39
      %s42 = ssub.s32 %s24, %s33
      %p43 = scmp.eq.s32.totalorder %s42, 0
      %s45 = sadd.s32 %s44, 1
      %s46 = scalar_select %p43, %s44, %s45
      %p49 = pneg %p43
      %p50 = scmp.eq.s32.totalorder %s15, 1
      %p51 = por %p49, %p50
      %p52 = scmp.ne.s32.totalorder %s44, %s47
      %p53 = scmp.eq.s32.totalorder %s15, 0
      %p54 = por %p52, %p53
      %p55 = scmp.ne.s32.totalorder %s44, %s47
      %p56 = scmp.eq.s32.totalorder %s20, 1
      %p57 = por %p55, %p56
      %p58 = scmp.ne.s32.totalorder %s47, %s48
      %p59 = scmp.eq.s32.totalorder %s20, 0
      %p60 = por %p58, %p59
      %p61 = scmp.ne.s32.totalorder %s47, %s48
      %p62 = scmp.eq.s32.totalorder %s21, 1
      %p63 = por %p61, %p62
      %p65 = scmp.ne.s32.totalorder %s48, %s64
      %p66 = scmp.eq.s32.totalorder %s21, 0
      %p67 = por %p65, %p66
      %s68 = ssub.s32 %s22, %s41
      %s69 = ssub.s32 %s23, %s37
      %s70 = sor.u32 %s68, %s69
      %s71 = ssub.s32 %s24, %s33
      %s72 = sor.u32 %s70, %s71
      %p73 = scmp.eq.s32.totalorder %s72, 0
      %s75 = sadd.s32 %s74, 1
      %s76 = scalar_select %p73, %s74, %s75
      %p79 = pneg %p73
      %p80 = scmp.eq.s32.totalorder %s15, 1
      %p81 = por %p79, %p80
      %p82 = scmp.ne.s32.totalorder %s74, %s77
      %p83 = scmp.eq.s32.totalorder %s15, 0
      %p84 = por %p82, %p83
      %p85 = scmp.ne.s32.totalorder %s74, %s77
      %p86 = scmp.eq.s32.totalorder %s20, 1
      %p87 = por %p85, %p86
      %p88 = scmp.ne.s32.totalorder %s77, %s78
      %p89 = scmp.eq.s32.totalorder %s20, 0
      %p90 = por %p88, %p89
      %p91 = scmp.ne.s32.totalorder %s77, %s78
      %p92 = scmp.eq.s32.totalorder %s21, 1
      %p93 = por %p91, %p92
      %p95 = scmp.ne.s32.totalorder %s78, %s94
      %p96 = scmp.eq.s32.totalorder %s21, 0
      %p97 = por %p95, %p96
      %s98 = ssub.s32 %s22, %s41
      %s99 = ssub.s32 %s23, %s37
      %s100 = sor.u32 %s98, %s99
      %s101 = ssub.s32 %s24, %s33
      %s102 = sor.u32 %s100, %s101
      %p103 = scmp.eq.s32.totalorder %s102, 0
      %s105 = sadd.s32 %s104, 1
      %s106 = scalar_select %p103, %s104, %s105
      %p109 = pneg %p103
      %p110 = scmp.eq.s32.totalorder %s15, 1
      %p111 = por %p109, %p110
      %p112 = scmp.ne.s32.totalorder %s104, %s107
      %p113 = scmp.eq.s32.totalorder %s15, 0
      %p114 = por %p112, %p113
      %p115 = scmp.ne.s32.totalorder %s104, %s107
      %p116 = scmp.eq.s32.totalorder %s20, 1
      %p117 = por %p115, %p116
      %p118 = scmp.ne.s32.totalorder %s107, %s108
      %p119 = scmp.eq.s32.totalorder %s20, 0
      %p120 = por %p118, %p119
      %p121 = scmp.ne.s32.totalorder %s107, %s108
      %p122 = scmp.eq.s32.totalorder %s21, 1
      %p123 = por %p121, %p122
      %p125 = scmp.ne.s32.totalorder %s108, %s124
      %p126 = scmp.eq.s32.totalorder %s21, 0
      %p127 = por %p125, %p126
      %p128 = scmp.le.s32.totalorder 1, %s15
      %p129 = scmp.lt.s32.totalorder %s15, 3
      %p130 = pnand %p128, %p129
      %p131 = pneg %p130
      // Predicated region
      $region9: #{tpu_custom_call.1} parent=5 // pred_check
        _
      $region10: #{tpu_custom_call.1} parent=5 // pred_check_branch
        %133 = sbr.rel (%p130) target = $region12
      $region11: #{tpu_custom_call.1} parent=5 // pred_region
        %s134 = ssub.s32 %s15, 1
        // Predicated region
        $region13: #{tpu_custom_call.1} parent=11 // pred_check
          %p135 = pneg %p60
        $region14: #{tpu_custom_call.1} parent=11 // pred_check_branch
          %137 = sbr.rel (%p135) target = $region16
        $region15: #{tpu_custom_call.1} parent=11 // pred_region
          %139 = vsyncadd [#allocation3], 0
          %s140 = smul.addr %s27, 2
          %s141 = scalar_lea.hbm %s0, %s140
          %s143 = sshll.u32 %s141, 4
          %s144 = int_to_ptr.hbm [resolvable:$true] %s143
          %s145 = sshll.u32 [#allocation2], 4
          %s146 = int_to_ptr.vmem [resolvable:$true] %s145
          %148 = dma.hbm_to_vmem [thread:$0]  %s144, 32, %s146, [#allocation3]
        $region16: #{tpu_custom_call.1} parent=11 // pred_fallthru
          _
      $region12: #{tpu_custom_call.1} parent=5 // pred_fallthru
        _
      %p149 = scmp.lt.s32.totalorder %s15, 2
      // Predicated region
      $region17: #{tpu_custom_call.1} parent=5 // pred_check
        %p150 = pneg %p149
      $region18: #{tpu_custom_call.1} parent=5 // pred_check_branch
        %152 = sbr.rel (%p150) target = $region20
      $region19: #{tpu_custom_call.1} parent=5 // pred_region
        // Predicated region
        $region21: #{tpu_custom_call.1} parent=19 // pred_check
          %p153 = pneg %p84
        $region22: #{tpu_custom_call.1} parent=19 // pred_check_branch
          %155 = sbr.rel (%p153) target = $region24
        $region23: #{tpu_custom_call.1} parent=19 // pred_region
          %s156 = sand.u32 %s74, 1
          %s157 = scalar_lea.sflag [#allocation6], %s156
          %s158 = sand.u32 %s74, 1
          %s159 = smul.addr %s158, 4
          %s160 = scalar_lea.vmem [#allocation5], %s159
          %162 = vsyncadd %s157, 0
          %s163 = sadd.s32 %s24, %s23
          %s164 = sadd.s32 %s163, %s22
          %s165 = smul.addr %s164, 4
          %s166 = scalar_lea.hbm %s1, %s165
          %s168 = sshll.u32 %s166, 4
          %s169 = int_to_ptr.hbm [resolvable:$true] %s168
          %s170 = sshll.u32 %s160, 4
          %s171 = int_to_ptr.vmem [resolvable:$true] %s170
          %173 = dma.hbm_to_vmem [thread:$0]  %s169, 64, %s171, %s157
        $region24: #{tpu_custom_call.1} parent=19 // pred_fallthru
          _
      $region20: #{tpu_custom_call.1} parent=5 // pred_fallthru
        _
      %p174 = scmp.le.s32.totalorder 1, %s15
      %p175 = scmp.lt.s32.totalorder %s15, 3
      %p176 = pnand %p174, %p175
      %p177 = pneg %p176
      // Predicated region
      $region25: #{tpu_custom_call.1} parent=5 // pred_check
        _
      $region26: #{tpu_custom_call.1} parent=5 // pred_check_branch
        %179 = sbr.rel (%p176) target = $region28
      $region27: #{tpu_custom_call.1} parent=5 // pred_region
        %s180 = ssub.s32 %s15, 1
        // Predicated region
        $region29: #{tpu_custom_call.1} parent=27 // pred_check
          %p181 = pneg %p60
        $region30: #{tpu_custom_call.1} parent=27 // pred_check_branch
          %183 = sbr.rel (%p181) target = $region32
        $region31: #{tpu_custom_call.1} parent=27 // pred_region
          %185 = dma.done [#allocation3], 32
        $region32: #{tpu_custom_call.1} parent=27 // pred_fallthru
          _
        %s186 = sand.u32 %s77, 1
        %s187 = scalar_lea.sflag [#allocation6], %s186
        %s188 = sand.u32 %s77, 1
        %s189 = smul.addr %s188, 4
        %s190 = scalar_lea.vmem [#allocation5], %s189
        // Predicated region
        $region33: #{tpu_custom_call.1} parent=27 // pred_check
          %p191 = pneg %p90
        $region34: #{tpu_custom_call.1} parent=27 // pred_check_branch
          %193 = sbr.rel (%p191) target = $region36
        $region35: #{tpu_custom_call.1} parent=27 // pred_region
          %195 = dma.done %s187, 64
        $region36: #{tpu_custom_call.1} parent=27 // pred_fallthru
          _
        %p196 = pneg %p60
        %p197 = pneg %p57
        %s198 = sand.u32 %s77, 1
        %s199 = scalar_lea.sflag [#allocation6], %s198
        %s200 = sand.u32 %s77, 1
        %s201 = smul.addr %s200, 4
        %s202 = scalar_lea.vmem [#allocation5], %s201
        %p203 = pneg %p90
        %p204 = pneg %p87
        %p205 = pneg %p120
        %p206 = pneg %p117
        %s207 = sand.u32 %s107, 1
        %s208 = scalar_lea.sflag [#allocation4], %s207
        %s209 = sand.u32 %s107, 1
        %s210 = smul.addr %s209, 4
        %s211 = scalar_lea.vmem [#allocation7], %s210
        %s212 = scalar_lea.vmem [#allocation2], %s25
        %v213 = vld [vmem:[%s212] sm:$0x1]
        %v214 = vld [vmem:[%s190] sm:$0xf]
        %v215 = vperm.slane %v213, 0
        %v216 = vmul.f32 %v214, %v215
        %217 = vst [vmem:[%s211] sm:$0xf] %v216
        %s218 = sand.u32 %s107, 1
        %s219 = scalar_lea.sflag [#allocation4], %s218
        %s220 = sand.u32 %s107, 1
        %s221 = smul.addr %s220, 4
        %s222 = scalar_lea.vmem [#allocation7], %s221
        // Predicated region
        $region37: #{tpu_custom_call.1} parent=27 // pred_check
          %p223 = pneg %p117
        $region38: #{tpu_custom_call.1} parent=27 // pred_check_branch
          %225 = sbr.rel (%p223) target = $region40
        $region39: #{tpu_custom_call.1} parent=27 // pred_region
          %227 = vsyncadd %s219, 0
          %s228 = sadd.s32 %s27, %s26
          %s229 = sadd.s32 %s228, %s25
          %s230 = smul.addr %s229, 4
          %s231 = scalar_lea.hbm %s2, %s230
          %s233 = sshll.u32 %s222, 4
          %s234 = int_to_ptr.vmem [resolvable:$true] %s233
          %s235 = sshll.u32 %s231, 4
          %s236 = int_to_ptr.hbm [resolvable:$true] %s235
          %238 = dma.vmem_to_hbm [thread:$0]  %s234, 64, %s236, %s219
        $region40: #{tpu_custom_call.1} parent=27 // pred_fallthru
          _
      $region28: #{tpu_custom_call.1} parent=5 // pred_fallthru
        _
      %p239 = scmp.le.s32.totalorder 2, %s15
      // Predicated region
      $region41: #{tpu_custom_call.1} parent=5 // pred_check
        %p240 = pneg %p239
      $region42: #{tpu_custom_call.1} parent=5 // pred_check_branch
        %242 = sbr.rel (%p240) target = $region44
      $region43: #{tpu_custom_call.1} parent=5 // pred_region
        %s243 = ssub.s32 %s15, 2
        // Predicated region
        $region45: #{tpu_custom_call.1} parent=43 // pred_check
          %p244 = pneg %p123
        $region46: #{tpu_custom_call.1} parent=43 // pred_check_branch
          %246 = sbr.rel (%p244) target = $region48
        $region47: #{tpu_custom_call.1} parent=43 // pred_region
          %s247 = sand.u32 %s108, 1
          %s248 = scalar_lea.sflag [#allocation4], %s247
          %s249 = sand.u32 %s108, 1
          %s250 = smul.addr %s249, 4
          %s251 = scalar_lea.vmem [#allocation7], %s250
          %253 = dma.done %s248, 64
        $region48: #{tpu_custom_call.1} parent=43 // pred_fallthru
          _
      $region44: #{tpu_custom_call.1} parent=5 // pred_fallthru
        _
    $region6: #{tpu_custom_call.1} parent=1 // loop_footer
      %s19 = sadd.s32 1, %s15
    $region7: #{tpu_custom_call.1} parent=1 // loop_footer_branch
      %14 = sbr.rel target = $region3
    $region8: #{tpu_custom_call.1} parent=1 // loop_exit
      _
    %254 = vsyncpa [#allocation3], 1
    %s255 = scalar_lea.sflag [#allocation3], 1
    %256 = vsyncpa %s255, 1
    %257 = vsyncpa [#allocation6], 1
    %s258 = scalar_lea.sflag [#allocation6], 1
    %259 = vsyncpa %s258, 1
    %260 = vsyncpa [#allocation4], 1
    %s261 = scalar_lea.sflag [#allocation4], 1
    %262 = vsyncpa %s261, 1

</llo_original>
